<compile_context>
chip_gen: v5e
topology: v5e:2x2
jax: 0.10.0
libtpu: 0.0.40
codegen_flags: <defaults>
</compile_context>

<pallas_src>
import functools

import jax
import jax.numpy as jnp
from jax.experimental import pallas as pl
from jax.experimental.pallas import tpu as pltpu

LN_EPS = 1e-5                       # torch.nn.LayerNorm default eps
_ROW_TILES = (256, 128, 64, 32, 16, 8)


# --------------------------------------------------------------------------
# Generation-aware tuning helpers
# --------------------------------------------------------------------------
@functools.lru_cache(maxsize=None)
def _device_kind():
    try:
        return jax.devices()[0].device_kind.lower()
    except Exception:
        return ""


def _is_v7():
    k = _device_kind()
    return ("v7" in k) or ("7x" in k)


def _vmem_limit_bytes():
    # v7x: 64 MiB physical VMEM -> leave headroom for Mosaic scratch.
    # v5e/v6e: 128 MiB physical -> allow larger resident blocks.
    return (48 if _is_v7() else 100) * 1024 * 1024


def _attn_block_budget_bytes():
    return (16 if _is_v7() else 28) * 1024 * 1024


def _compiler_params():
    return pltpu.CompilerParams(dimension_semantics=("parallel",),
                                vmem_limit_bytes=_vmem_limit_bytes())


def _row_tile(n):
    """Largest MXU-friendly row tile; prefer >=2 grid steps (v7x has 2 TCs)."""
    for tm in _ROW_TILES:
        if n % tm == 0 and n // tm >= 2:
            return tm
    for tm in _ROW_TILES:
        if n % tm == 0:
            return tm
    return min(n, _ROW_TILES[0])


def _mxu_precision(dtype):
    # f32 operands: force the exact multi-pass MXU path so the f32 kernel is
    # numerically equivalent to the PyTorch module.  bf16 operands are native.
    return (jax.lax.Precision.HIGHEST if dtype == jnp.float32
            else jax.lax.Precision.DEFAULT)


def _layer_norm(x, gamma, beta):
    mu = jnp.mean(x, axis=-1, keepdims=True)
    var = jnp.mean(jnp.square(x - mu), axis=-1, keepdims=True)
    return (x - mu) * jax.lax.rsqrt(var + LN_EPS) * gamma + beta


# --------------------------------------------------------------------------
# Kernels
# --------------------------------------------------------------------------
def qkv_kernel(x_ref, w_ref, b_ref, q_ref, k_ref, v_ref, *, precision):
    """One (TM, D) @ (D, 3D) matmul; three lane-dense (TM, D) outputs."""
    d = q_ref.shape[-1]
    acc = jnp.dot(x_ref[...], w_ref[...],
                  preferred_element_type=jnp.float32, precision=precision)
    acc = acc + b_ref[...]
    q_ref[...] = acc[:, :d].astype(q_ref.dtype)
    k_ref[...] = acc[:, d:2 * d].astype(k_ref.dtype)
    v_ref[...] = acc[:, 2 * d:].astype(v_ref.dtype)


def attn_kernel(q_ref, k_ref, v_ref, o_ref, *, scale, precision):
    """Softmax(Q K^T * scale) V for a block of heads (HB, S, Dh)."""
    q = q_ref[...] * scale                         # pre-scale: O(S*Dh), not O(S^2)
    s = jnp.einsum("hqd,hkd->hqk", q, k_ref[...],
                   preferred_element_type=jnp.float32, precision=precision)
    s = s - jnp.max(s, axis=-1, keepdims=True)
    p = jnp.exp(s)
    inv_l = 1.0 / jnp.sum(p, axis=-1, keepdims=True)   # exact reciprocal
    ctx = jnp.einsum("hqk,hkd->hqd", p.astype(v_ref.dtype), v_ref[...],
                     preferred_element_type=jnp.float32, precision=precision)
    o_ref[...] = (ctx * inv_l).astype(o_ref.dtype)     # normalize after PV


def epilogue_kernel(ctx_ref, x_ref, wo_ref, bo_ref, g1_ref, be1_ref,
                    w1_ref, b1_ref, w2_ref, b2_ref, g2_ref, be2_ref,
                    o_ref, *, precision):
    """LN2( relu(LN1(ctx@Wo + bo + x) @ W1 + b1) @ W2 + b2 + LN1(...) )."""
    f32 = jnp.float32
    x = x_ref[...].astype(f32)
    out = jnp.dot(ctx_ref[...], wo_ref[...],
                  preferred_element_type=f32, precision=precision)
    out1 = _layer_norm(out + bo_ref[...] + x, g1_ref[...], be1_ref[...])
    h = jnp.dot(out1.astype(w1_ref.dtype), w1_ref[...],
                preferred_element_type=f32, precision=precision) + b1_ref[...]
    h = jnp.maximum(h, 0.0)
    out2 = jnp.dot(h.astype(w2_ref.dtype), w2_ref[...],
                   preferred_element_type=f32, precision=precision) + b2_ref[...]
    y = _layer_norm(out2 + out1, g2_ref[...], be2_ref[...])
    o_ref[...] = y.astype(o_ref.dtype)


# --------------------------------------------------------------------------
# Pallas wrappers
# --------------------------------------------------------------------------
def qkv_proj(x2d, w_qkv, b_qkv):
    n, dm = x2d.shape
    d3 = w_qkv.shape[1]
    d = d3 // 3
    tm = _row_tile(n)
    row = pl.BlockSpec((tm, d), lambda i: (i, 0))
    return pl.pallas_call(
        functools.partial(qkv_kernel, precision=_mxu_precision(x2d.dtype)),
        grid=(pl.cdiv(n, tm),),
        in_specs=[pl.BlockSpec((tm, dm), lambda i: (i, 0)),
                  pl.BlockSpec((dm, d3), lambda i: (0, 0)),
                  pl.BlockSpec((1, d3), lambda i: (0, 0))],
        out_specs=(row, row, row),
        out_shape=(jax.ShapeDtypeStruct((n, d), x2d.dtype),) * 3,
        compiler_params=_compiler_params(),
    )(x2d, w_qkv, b_qkv)


def sdp_attention(q, k, v, scale):
    bh, s, dh = q.shape
    isz = jnp.dtype(q.dtype).itemsize
    # 2x accounts for BlockSpec double-buffering of q/k/v/o blocks; the f32
    # score matrix and f32 context live once inside the kernel.
    per_head = 2 * 4 * s * dh * isz + s * s * 4 + s * dh * 4
    hb = max(1, min(bh, _attn_block_budget_bytes() // per_head))
    hb = min(hb, max(1, -(-bh // 2)))      # >=2 grid steps (v7x megacore)
    spec = pl.BlockSpec((hb, s, dh), lambda b: (b, 0, 0))
    return pl.pallas_call(
        functools.partial(attn_kernel, scale=scale,
                          precision=_mxu_precision(q.dtype)),
        grid=(pl.cdiv(bh, hb),),
        in_specs=[spec, spec, spec],
        out_specs=spec,
        out_shape=jax.ShapeDtypeStruct((bh, s, dh), q.dtype),
        compiler_params=_compiler_params(),
    )(q, k, v)


def attn_ffn_epilogue(ctx2d, x2d, prep):
    n, d = ctx2d.shape
    hf = prep["w1_t"].shape[1]
    tm = _row_tile(n)
    row = lambda i: (i, 0)
    cst = lambda i: (0, 0)
    return pl.pallas_call(
        functools.partial(epilogue_kernel, precision=_mxu_precision(ctx2d.dtype)),
        grid=(pl.cdiv(n, tm),),
        in_specs=[pl.BlockSpec((tm, d), row),    # attention context
                  pl.BlockSpec((tm, d), row),    # residual x
                  pl.BlockSpec((d, d), cst),     # Wo^T
                  pl.BlockSpec((1, d), cst),     # bo
                  pl.BlockSpec((1, d), cst),     # LN1 gamma
                  pl.BlockSpec((1, d), cst),     # LN1 beta
                  pl.BlockSpec((d, hf), cst),    # W1^T
                  pl.BlockSpec((1, hf), cst),    # b1
                  pl.BlockSpec((hf, d), cst),    # W2^T
                  pl.BlockSpec((1, d), cst),     # b2
                  pl.BlockSpec((1, d), cst),     # LN2 gamma
                  pl.BlockSpec((1, d), cst)],    # LN2 beta
        out_specs=pl.BlockSpec((tm, d), row),
        out_shape=jax.ShapeDtypeStruct((n, d), jnp.float32),
        compiler_params=_compiler_params(),
    )(ctx2d, x2d, prep["wo_t"], prep["bo"], prep["g1"], prep["be1"],
      prep["w1_t"], prep["b1"], prep["w2_t"], prep["b2"], prep["g2"], prep["be2"])


# --------------------------------------------------------------------------
# Parameter prep (one-time, outside the hot path), forward, and reference
# --------------------------------------------------------------------------
def prepare_encoder_params(p, compute_dtype=jnp.float32):
    """Hoists all transposes / qkv concat / dtype casts out of the forward."""
    cd = compute_dtype
    f32 = jnp.float32
    return dict(
        num_head=p["num_head"],
        w_qkv=jnp.concatenate([p["wq"].T, p["wk"].T, p["wv"].T], axis=1).astype(cd),
        b_qkv=jnp.concatenate([p["bq"], p["bk"], p["bv"]], axis=1).astype(f32),
        wo_t=p["wo"].T.astype(cd), bo=p["bo"].astype(f32),
        w1_t=p["w1"].T.astype(cd), b1=p["b1"].astype(f32),
        w2_t=p["w2"].T.astype(cd), b2=p["b2"].astype(f32),
        g1=p["g1"].astype(f32), be1=p["be1"].astype(f32),
        g2=p["g2"].astype(f32), be2=p["be2"].astype(f32),
    )


def encoder_forward(x, prep):
    """compute dtype is taken from the prepared weights (f32 or bf16 operands;
    accumulation, softmax, residual and LayerNorm math are always f32).
    Note: in the bf16 path the residual x is added after a bf16 cast, so
    residual precision differs slightly from the f32 PyTorch semantics."""
    B, S, D = x.shape
    H = prep["num_head"]
    Dh = D // H
    cd = prep["w_qkv"].dtype

    x2 = x.reshape(B * S, D).astype(cd)

    q2, k2, v2 = qkv_proj(x2, prep["w_qkv"], prep["b_qkv"])
    # Exact PyTorch `.view(batch*num_head, -1, dim_head)` (flat, free reshape).
    q = q2.reshape(B * H, S, Dh)
    k = k2.reshape(B * H, S, Dh)
    v = v2.reshape(B * H, S, Dh)

    ctx = sdp_attention(q, k, v, float(Dh) ** (-0.5))
    ctx2 = ctx.reshape(B * S, D)   # == context.view(batch, -1, dim_head*num_head)

    out = attn_ffn_epilogue(ctx2, x2, prep)
    return out.reshape(B, S, D)


def encoder_ref(x, p):
    """Pure-JAX reference (scoped highest matmul precision, no global config)."""
    def linear(a, w, b):
        return a @ w.T + b[0]

    def ln(a, g, b):
        mu = a.mean(-1, keepdims=True)
        var = ((a - mu) ** 2).mean(-1, keepdims=True)
        return (a - mu) / jnp.sqrt(var + LN_EPS) * g[0] + b[0]

    B, S, D = x.shape
    H = p["num_head"]
    Dh = D // H
    with jax.default_matmul_precision("highest"):
        Q = linear(x, p["wq"], p["bq"]).reshape(B * H, -1, Dh)
        K = linear(x, p["wk"], p["bk"]).reshape(B * H, -1, Dh)
        V = linear(x, p["wv"], p["bv"]).reshape(B * H, -1, Dh)
        scale = float(Dh) ** (-0.5)
        att = jax.nn.softmax(jnp.einsum("bij,bkj->bik", Q, K) * scale, axis=-1)
        ctx = jnp.einsum("bik,bkd->bid", att, V).reshape(B, -1, D)
        out = ln(linear(ctx, p["wo"], p["bo"]) + x, p["g1"], p["be1"])
        h = jax.nn.relu(linear(out, p["w1"], p["b1"]))
        out2 = ln(linear(h, p["w2"], p["b2"]) + out, p["g2"], p["be2"])
    return out2


def init_params(key, dim_model, num_head, hidden):
    ks = jax.random.split(key, 12)
    f32 = jnp.float32

    def w(k, shape, fan_in):
        return (jax.random.normal(k, shape, f32) / jnp.sqrt(fan_in)).astype(f32)

    return dict(
        num_head=num_head,
        wq=w(ks[0], (dim_model, dim_model), dim_model), bq=w(ks[1], (1, dim_model), dim_model),
        wk=w(ks[2], (dim_model, dim_model), dim_model), bk=w(ks[3], (1, dim_model), dim_model),
        wv=w(ks[4], (dim_model, dim_model), dim_model), bv=w(ks[5], (1, dim_model), dim_model),
        wo=w(ks[6], (dim_model, dim_model), dim_model), bo=w(ks[7], (1, dim_model), dim_model),
        w1=w(ks[8], (hidden, dim_model), dim_model),    b1=w(ks[9], (1, hidden), dim_model),
        w2=w(ks[10], (dim_model, hidden), hidden),      b2=w(ks[11], (1, dim_model), hidden),
        g1=jnp.ones((1, dim_model), f32),  be1=jnp.zeros((1, dim_model), f32),
        g2=jnp.ones((1, dim_model), f32),  be2=jnp.zeros((1, dim_model), f32),
    )


if __name__ == "__main__":
    B, S, dim_model, num_head, hidden = 2, 8, 32, 4, 64

    key = jax.random.PRNGKey(0)
    kx, kp = jax.random.split(key)
    x = jax.random.normal(kx, (B, S, dim_model), jnp.float32)
    params = init_params(kp, dim_model, num_head, hidden)

    ref = encoder_ref(x, params)

    # f32 path: exact PyTorch-equivalent semantics (checked strictly).
    prep_f32 = prepare_encoder_params(params, jnp.float32)
    out = jax.block_until_ready(encoder_forward(x, prep_f32))
    assert out.shape == (B, S, dim_model)
    if not bool(jnp.allclose(out, ref, rtol=2e-3, atol=2e-3)):
        err = float(jnp.max(jnp.abs(out - ref)))
        raise AssertionError(f"Pallas encoder (f32) mismatch vs reference "
                             f"(max abs err {err:.3e})")

    # bf16 MXU-operand path (f32 accumulation) — smoke test: runs and is finite.
    prep_bf16 = prepare_encoder_params(params, jnp.bfloat16)
    out_bf16 = jax.block_until_ready(encoder_forward(x, prep_bf16))
    assert out_bf16.shape == (B, S, dim_model)
    assert bool(jnp.all(jnp.isfinite(out_bf16.astype(jnp.float32))))

    print("KERNEL_OK")
</pallas_src>

<mosaic_0001>
module attributes {stable_mosaic.version = 11 : i64} {
  func.func @qkv_kernel(%arg0: i32, %arg1: memref<8x32xf32, #tpu.memory_space<vmem>>, %arg2: memref<32x96xf32, #tpu.memory_space<vmem>>, %arg3: memref<1x96xf32, #tpu.memory_space<vmem>>, %arg4: memref<8x32xf32, #tpu.memory_space<vmem>>, %arg5: memref<8x32xf32, #tpu.memory_space<vmem>>, %arg6: memref<8x32xf32, #tpu.memory_space<vmem>>) attributes {dimension_semantics = [#tpu.dimension_semantics<parallel>], iteration_bounds = array<i64: 2>, scalar_prefetch = 0 : i64, scratch_operands = 0 : i64, tpu.core_type = #tpu.core_type<tc>, window_params = [{transform_indices = @transform_0, window_bounds = array<i64: 8, 32>}, {pipeline_mode = #tpu.pipeline_mode<synchronous>, transform_indices = @transform_1, window_bounds = array<i64: 32, 96>}, {pipeline_mode = #tpu.pipeline_mode<synchronous>, transform_indices = @transform_2, window_bounds = array<i64: 1, 96>}, {transform_indices = @transform_3, window_bounds = array<i64: 8, 32>}, {transform_indices = @transform_4, window_bounds = array<i64: 8, 32>}, {transform_indices = @transform_5, window_bounds = array<i64: 8, 32>}]} {
    %c0 = arith.constant 0 : index
    %c0_0 = arith.constant 0 : index
    %0 = vector.load %arg1[%c0, %c0_0] : memref<8x32xf32, #tpu.memory_space<vmem>>, vector<8x32xf32>
    %c0_1 = arith.constant 0 : index
    %c0_2 = arith.constant 0 : index
    %1 = vector.load %arg2[%c0_1, %c0_2] : memref<32x96xf32, #tpu.memory_space<vmem>>, vector<32x96xf32>
    %cst = arith.constant dense<0.000000e+00> : vector<8x96xf32>
    %2 = tpu.matmul %0, %1, %cst {dimension_numbers = #tpu.dot_dimension_numbers<[1], [0], [0], [1], [0, 0, 1, 1], [], []>, precision = #tpu.contract_precision<fp32>} : vector<8x32xf32>, vector<32x96xf32>, vector<8x96xf32> -> vector<8x96xf32>
    %c0_3 = arith.constant 0 : index
    %c0_4 = arith.constant 0 : index
    %3 = vector.load %arg3[%c0_3, %c0_4] : memref<1x96xf32, #tpu.memory_space<vmem>>, vector<1x96xf32>
    %4 = vector.broadcast %3 : vector<1x96xf32> to vector<8x96xf32>
    %5 = arith.addf %2, %4 : vector<8x96xf32>
    %6 = vector.extract_strided_slice %5 {offsets = [0, 0], sizes = [8, 32], strides = [1, 1]} : vector<8x96xf32> to vector<8x32xf32>
    %c0_5 = arith.constant 0 : index
    %c0_6 = arith.constant 0 : index
    %7 = vector.load %arg4[%c0_5, %c0_6] : memref<8x32xf32, #tpu.memory_space<vmem>>, vector<8x32xf32>
    tpu.vector_store %arg4[%c0_5, %c0_6], %6 {strides = array<i32>} : memref<8x32xf32, #tpu.memory_space<vmem>>, vector<8x32xf32>,
    %8 = vector.extract_strided_slice %5 {offsets = [0, 32], sizes = [8, 32], strides = [1, 1]} : vector<8x96xf32> to vector<8x32xf32>
    %c0_7 = arith.constant 0 : index
    %c0_8 = arith.constant 0 : index
    %9 = vector.load %arg5[%c0_7, %c0_8] : memref<8x32xf32, #tpu.memory_space<vmem>>, vector<8x32xf32>
    tpu.vector_store %arg5[%c0_7, %c0_8], %8 {strides = array<i32>} : memref<8x32xf32, #tpu.memory_space<vmem>>, vector<8x32xf32>,
    %10 = vector.extract_strided_slice %5 {offsets = [0, 64], sizes = [8, 32], strides = [1, 1]} : vector<8x96xf32> to vector<8x32xf32>
    %c0_9 = arith.constant 0 : index
    %c0_10 = arith.constant 0 : index
    %11 = vector.load %arg6[%c0_9, %c0_10] : memref<8x32xf32, #tpu.memory_space<vmem>>, vector<8x32xf32>
    tpu.vector_store %arg6[%c0_9, %c0_10], %10 {strides = array<i32>} : memref<8x32xf32, #tpu.memory_space<vmem>>, vector<8x32xf32>,
    return
  }
  func.func @transform_0(%arg0: i32) -> (i32, i32) {
    %c0_i32 = arith.constant 0 : i32
    %c0_i32_0 = arith.constant 0 : i32
    return %arg0, %c0_i32 : i32, i32
  }
  func.func @transform_1(%arg0: i32) -> (i32, i32) {
    %c0_i32 = arith.constant 0 : i32
    %c0_i32_0 = arith.constant 0 : i32
    %c0_i32_1 = arith.constant 0 : i32
    return %c0_i32, %c0_i32_0 : i32, i32
  }
  func.func @transform_2(%arg0: i32) -> (i32, i32) {
    %c0_i32 = arith.constant 0 : i32
    %c0_i32_0 = arith.constant 0 : i32
    %c0_i32_1 = arith.constant 0 : i32
    return %c0_i32, %c0_i32_0 : i32, i32
  }
  func.func @transform_3(%arg0: i32) -> (i32, i32) {
    %c0_i32 = arith.constant 0 : i32
    %c0_i32_0 = arith.constant 0 : i32
    return %arg0, %c0_i32 : i32, i32
  }
  func.func @transform_4(%arg0: i32) -> (i32, i32) {
    %c0_i32 = arith.constant 0 : i32
    %c0_i32_0 = arith.constant 0 : i32
    return %arg0, %c0_i32 : i32, i32
  }
  func.func @transform_5(%arg0: i32) -> (i32, i32) {
    %c0_i32 = arith.constant 0 : i32
    %c0_i32_0 = arith.constant 0 : i32
    return %arg0, %c0_i32 : i32, i32
  }
}

</mosaic_0001>

<llo_original>
// kernel: tpu_custom_call.1
$region0: #{tpu_custom_call.1}
  #allocation0 [shape = 'u32[]', space=smem, size = 0x4, offset = 0x4, fixed_abs, tag = 'smem constant byte address 0x4 - core index']
  #allocation1 [shape = 'u32[72,128]{1,0:T(1,128)}', space=vmem, size = 0x9000, scoped, tag = 'internal scratch']
  %s0 = inlined_call_operand.hbm [shape: f32[16,32], index: 0, kind: input, shape index: {}]
  %s1 = inlined_call_operand.hbm [shape: f32[32,96], index: 1, kind: input, shape index: {}]
  %s2 = inlined_call_operand.vmem [shape: f32[1,96], index: 2, kind: input, shape index: {}]
  %s3 = inlined_call_operand.hbm [shape: f32[16,32], index: 3, kind: output, shape index: {0}]
  %s4 = inlined_call_operand.hbm [shape: f32[16,32], index: 4, kind: output, shape index: {1}]
  %s5 = inlined_call_operand.hbm [shape: f32[16,32], index: 5, kind: output, shape index: {2}]
  %6 = xla_tuple %s3, %s4, %s5
  %s7 = sld [smem:[#allocation0]]
  $region69: #{tpu_custom_call.1} parent=0
    _
  %s9 = ssub.s32 1, %s7
  %s10 = scalar_select 0, %s9, %s7
  $region1: #{tpu_custom_call.1} parent=0
    #allocation2 [shape = 'u8[8192]{0}', space=vmem, size = 0x2000, scoped, tag = 'input window, operand 0']
    #allocation3 [shape = 's32[2]{0}', space=sflag, size = 0x8, scoped, tag = 'scoped memory for tpu_custom_call.1']
    #allocation4 [shape = 's32[2]{0}', space=sflag, size = 0x8, scoped, tag = 'scoped memory for tpu_custom_call.1']
    #allocation5 [shape = 'u8[16384]{0}', space=vmem, size = 0x4000, scoped, tag = 'input window, operand 1, single buffered']
    #allocation6 [shape = 's32[1]{0}', space=sflag, size = 0x4, scoped, tag = 'scoped memory for tpu_custom_call.1']
    #allocation7 [shape = 'u8[8192]{0}', space=vmem, size = 0x2000, scoped, tag = 'output window, operand 0']
    #allocation8 [shape = 'u8[8192]{0}', space=vmem, size = 0x2000, scoped, tag = 'output window, operand 1']
    #allocation9 [shape = 's32[2]{0}', space=sflag, size = 0x8, scoped, tag = 'scoped memory for tpu_custom_call.1']
    #allocation10 [shape = 'u8[8192]{0}', space=vmem, size = 0x2000, scoped, tag = 'output window, operand 2']
    %11 = vsyncpa [#allocation3], 0
    %s12 = scalar_lea.sflag [#allocation3], 1
    %13 = vsyncpa %s12, 0
    %14 = vsyncpa [#allocation6], 0
    %15 = vsyncpa [#allocation4], 0
    %s16 = scalar_lea.sflag [#allocation4], 1
    %17 = vsyncpa %s16, 0
    %18 = vsyncpa [#allocation9], 0
    %s19 = scalar_lea.sflag [#allocation9], 1
    %20 = vsyncpa %s19, 0
    loop: start=0, step=1, limit=4
    $region2: #{tpu_custom_call.1} parent=1 // loop_pre_header
      _
    $region3: #{tpu_custom_call.1} parent=1 // loop_header
      %s22 = sphi 0, %s26
      %p23 = scmp.ge.s32.totalorder %s22, 4
      %s32 = sphi 0, %s34
      %s35 = sphi 0, %s32
      %s36 = sphi 0, %s35
      %s52 = sphi 0, %s36
      %s56 = sphi 0, %s56
      %s58 = sphi 0, %s56
      %s59 = sphi 0, %s58
      %s73 = sphi 0, %s59
      %s77 = sphi 0, %s77
      %s79 = sphi 0, %s77
      %s80 = sphi 0, %s79
      %s94 = sphi 0, %s80
      %s100 = sphi 0, %s102
      %s103 = sphi 0, %s100
      %s104 = sphi 0, %s103
      %s120 = sphi 0, %s104
      %s126 = sphi 0, %s128
      %s129 = sphi 0, %s126
      %s130 = sphi 0, %s129
      %s146 = sphi 0, %s130
      %s152 = sphi 0, %s154
      %s155 = sphi 0, %s152
      %s156 = sphi 0, %s155
      %s172 = sphi 0, %s156
    $region4: #{tpu_custom_call.1} parent=1 // loop_header_branch
      %25 = sbr.rel (%p23) target = $region8
    $region5: #{tpu_custom_call.1} parent=1 // loop_body
      %s27 = ssub.s32 %s22, 1
      %s28 = ssub.s32 %s22, 2
      %s29 = sadd.s32 %s22, 1
      %s30 = ssub.s32 %s22, %s29
      %p31 = scmp.eq.s32.totalorder %s30, 0
      %s33 = sadd.s32 %s32, 1
      %s34 = scalar_select %p31, %s32, %s33
      %p37 = pneg %p31
      %p38 = scmp.eq.s32.totalorder %s22, 1
      %p39 = por %p37, %p38
      %p40 = scmp.ne.s32.totalorder %s32, %s35
      %p41 = scmp.eq.s32.totalorder %s22, 0
      %p42 = por %p40, %p41
      %p43 = scmp.ne.s32.totalorder %s32, %s35
      %p44 = scmp.eq.s32.totalorder %s27, 1
      %p45 = por %p43, %p44
      %p46 = scmp.ne.s32.totalorder %s35, %s36
      %p47 = scmp.eq.s32.totalorder %s27, 0
      %p48 = por %p46, %p47
      %p49 = scmp.ne.s32.totalorder %s35, %s36
      %p50 = scmp.eq.s32.totalorder %s28, 1
      %p51 = por %p49, %p50
      %p53 = scmp.ne.s32.totalorder %s36, %s52
      %p54 = scmp.eq.s32.totalorder %s28, 0
      %p55 = por %p53, %p54
      %s57 = sadd.s32 %s56, 1
      %p60 = scmp.eq.s32.totalorder %s22, 1
      %p61 = scmp.ne.s32.totalorder %s56, %s58
      %p62 = scmp.eq.s32.totalorder %s22, 0
      %p63 = por %p61, %p62
      %p64 = scmp.ne.s32.totalorder %s56, %s58
      %p65 = scmp.eq.s32.totalorder %s27, 1
      %p66 = por %p64, %p65
      %p67 = scmp.ne.s32.totalorder %s58, %s59
      %p68 = scmp.eq.s32.totalorder %s27, 0
      %p69 = por %p67, %p68
      %p70 = scmp.ne.s32.totalorder %s58, %s59
      %p71 = scmp.eq.s32.totalorder %s28, 1
      %p72 = por %p70, %p71
      %p74 = scmp.ne.s32.totalorder %s59, %s73
      %p75 = scmp.eq.s32.totalorder %s28, 0
      %p76 = por %p74, %p75
      %s78 = sadd.s32 %s77, 1
      %p81 = scmp.eq.s32.totalorder %s22, 1
      %p82 = scmp.ne.s32.totalorder %s77, %s79
      %p83 = scmp.eq.s32.totalorder %s22, 0
      %p84 = por %p82, %p83
      %p85 = scmp.ne.s32.totalorder %s77, %s79
      %p86 = scmp.eq.s32.totalorder %s27, 1
      %p87 = por %p85, %p86
      %p88 = scmp.ne.s32.totalorder %s79, %s80
      %p89 = scmp.eq.s32.totalorder %s27, 0
      %p90 = por %p88, %p89
      %p91 = scmp.ne.s32.totalorder %s79, %s80
      %p92 = scmp.eq.s32.totalorder %s28, 1
      %p93 = por %p91, %p92
      %p95 = scmp.ne.s32.totalorder %s80, %s94
      %p96 = scmp.eq.s32.totalorder %s28, 0
      %p97 = por %p95, %p96
      %s98 = ssub.s32 %s22, %s29
      %p99 = scmp.eq.s32.totalorder %s98, 0
      %s101 = sadd.s32 %s100, 1
      %s102 = scalar_select %p99, %s100, %s101
      %p105 = pneg %p99
      %p106 = scmp.eq.s32.totalorder %s22, 1
      %p107 = por %p105, %p106
      %p108 = scmp.ne.s32.totalorder %s100, %s103
      %p109 = scmp.eq.s32.totalorder %s22, 0
      %p110 = por %p108, %p109
      %p111 = scmp.ne.s32.totalorder %s100, %s103
      %p112 = scmp.eq.s32.totalorder %s27, 1
      %p113 = por %p111, %p112
      %p114 = scmp.ne.s32.totalorder %s103, %s104
      %p115 = scmp.eq.s32.totalorder %s27, 0
      %p116 = por %p114, %p115
      %p117 = scmp.ne.s32.totalorder %s103, %s104
      %p118 = scmp.eq.s32.totalorder %s28, 1
      %p119 = por %p117, %p118
      %p121 = scmp.ne.s32.totalorder %s104, %s120
      %p122 = scmp.eq.s32.totalorder %s28, 0
      %p123 = por %p121, %p122
      %s124 = ssub.s32 %s22, %s29
      %p125 = scmp.eq.s32.totalorder %s124, 0
      %s127 = sadd.s32 %s126, 1
      %s128 = scalar_select %p125, %s126, %s127
      %p131 = pneg %p125
      %p132 = scmp.eq.s32.totalorder %s22, 1
      %p133 = por %p131, %p132
      %p134 = scmp.ne.s32.totalorder %s126, %s129
      %p135 = scmp.eq.s32.totalorder %s22, 0
      %p136 = por %p134, %p135
      %p137 = scmp.ne.s32.totalorder %s126, %s129
      %p138 = scmp.eq.s32.totalorder %s27, 1
      %p139 = por %p137, %p138
      %p140 = scmp.ne.s32.totalorder %s129, %s130
      %p141 = scmp.eq.s32.totalorder %s27, 0
      %p142 = por %p140, %p141
      %p143 = scmp.ne.s32.totalorder %s129, %s130
      %p144 = scmp.eq.s32.totalorder %s28, 1
      %p145 = por %p143, %p144
      %p147 = scmp.ne.s32.totalorder %s130, %s146
      %p148 = scmp.eq.s32.totalorder %s28, 0
      %p149 = por %p147, %p148
      %s150 = ssub.s32 %s22, %s29
      %p151 = scmp.eq.s32.totalorder %s150, 0
      %s153 = sadd.s32 %s152, 1
      %s154 = scalar_select %p151, %s152, %s153
      %p157 = pneg %p151
      %p158 = scmp.eq.s32.totalorder %s22, 1
      %p159 = por %p157, %p158
      %p160 = scmp.ne.s32.totalorder %s152, %s155
      %p161 = scmp.eq.s32.totalorder %s22, 0
      %p162 = por %p160, %p161
      %p163 = scmp.ne.s32.totalorder %s152, %s155
      %p164 = scmp.eq.s32.totalorder %s27, 1
      %p165 = por %p163, %p164
      %p166 = scmp.ne.s32.totalorder %s155, %s156
      %p167 = scmp.eq.s32.totalorder %s27, 0
      %p168 = por %p166, %p167
      %p169 = scmp.ne.s32.totalorder %s155, %s156
      %p170 = scmp.eq.s32.totalorder %s28, 1
      %p171 = por %p169, %p170
      %p173 = scmp.ne.s32.totalorder %s156, %s172
      %p174 = scmp.eq.s32.totalorder %s28, 0
      %p175 = por %p173, %p174
      %p176 = scmp.le.s32.totalorder 1, %s22
      %p177 = scmp.lt.s32.totalorder %s22, 3
      %p178 = pnand %p176, %p177
      %p179 = pneg %p178
      // Predicated region
      $region9: #{tpu_custom_call.1} parent=5 // pred_check
        _
      $region10: #{tpu_custom_call.1} parent=5 // pred_check_branch
        %181 = sbr.rel (%p178) target = $region12
      $region11: #{tpu_custom_call.1} parent=5 // pred_region
        %s182 = ssub.s32 %s22, 1
        // Predicated region
        $region13: #{tpu_custom_call.1} parent=11 // pred_check
          %p183 = pneg %p69
        $region14: #{tpu_custom_call.1} parent=11 // pred_check_branch
          %185 = sbr.rel (%p183) target = $region16
        $region15: #{tpu_custom_call.1} parent=11 // pred_region
          %187 = vsyncadd [#allocation6], 0
          %s188 = sshll.u32 %s1, 4
          %s189 = int_to_ptr.hbm [resolvable:$true] %s188
          %s190 = sshll.u32 [#allocation5], 4
          %s191 = int_to_ptr.vmem [resolvable:$true] %s190
          %196 = dma.hbm_to_vmem [thread:$0]  %s189, 512, %s191, [#allocation6], 128, 128, 8
        $region16: #{tpu_custom_call.1} parent=11 // pred_fallthru
          _
        // Predicated region
        $region17: #{tpu_custom_call.1} parent=11 // pred_check
          %p197 = pneg %p90
        $region18: #{tpu_custom_call.1} parent=11 // pred_check_branch
          %199 = sbr.rel (%p197) target = $region20
        $region19: #{tpu_custom_call.1} parent=11 // pred_region
          _
        $region20: #{tpu_custom_call.1} parent=11 // pred_fallthru
          _
      $region12: #{tpu_custom_call.1} parent=5 // pred_fallthru
        _
      %p200 = scmp.lt.s32.totalorder %s22, 2
      // Predicated region
      $region21: #{tpu_custom_call.1} parent=5 // pred_check
        %p201 = pneg %p200
      $region22: #{tpu_custom_call.1} parent=5 // pred_check_branch
        %203 = sbr.rel (%p201) target = $region24
      $region23: #{tpu_custom_call.1} parent=5 // pred_region
        // Predicated region
        $region25: #{tpu_custom_call.1} parent=23 // pred_check
          %p204 = pneg %p42
        $region26: #{tpu_custom_call.1} parent=23 // pred_check_branch
          %206 = sbr.rel (%p204) target = $region28
        $region27: #{tpu_custom_call.1} parent=23 // pred_region
          %s207 = sand.u32 %s32, 1
          %s208 = scalar_lea.sflag [#allocation3], %s207
          %s209 = sand.u32 %s32, 1
          %s210 = smul.addr %s209, 8
          %s211 = scalar_lea.vmem [#allocation2], %s210
          %213 = vsyncadd %s208, 0
          %s214 = smul.addr %s22, 8
          %s215 = scalar_lea.hbm %s0, %s214
          %s217 = sshll.u32 %s215, 4
          %s218 = int_to_ptr.hbm [resolvable:$true] %s217
          %s219 = sshll.u32 %s211, 4
          %s220 = int_to_ptr.vmem [resolvable:$true] %s219
          %222 = dma.hbm_to_vmem [thread:$0]  %s218, 128, %s220, %s208
        $region28: #{tpu_custom_call.1} parent=23 // pred_fallthru
          _
      $region24: #{tpu_custom_call.1} parent=5 // pred_fallthru
        _
      %p223 = scmp.le.s32.totalorder 1, %s22
      %p224 = scmp.lt.s32.totalorder %s22, 3
      %p225 = pnand %p223, %p224
      %p226 = pneg %p225
      // Predicated region
      $region29: #{tpu_custom_call.1} parent=5 // pred_check
        _
      $region30: #{tpu_custom_call.1} parent=5 // pred_check_branch
        %228 = sbr.rel (%p225) target = $region32
      $region31: #{tpu_custom_call.1} parent=5 // pred_region
        %s229 = ssub.s32 %s22, 1
        %s230 = sand.u32 %s35, 1
        %s231 = scalar_lea.sflag [#allocation3], %s230
        %s232 = sand.u32 %s35, 1
        %s233 = smul.addr %s232, 8
        %s234 = scalar_lea.vmem [#allocation2], %s233
        // Predicated region
        $region33: #{tpu_custom_call.1} parent=31 // pred_check
          %p235 = pneg %p48
        $region34: #{tpu_custom_call.1} parent=31 // pred_check_branch
          %237 = sbr.rel (%p235) target = $region36
        $region35: #{tpu_custom_call.1} parent=31 // pred_region
          %239 = dma.done %s231, 128
        $region36: #{tpu_custom_call.1} parent=31 // pred_fallthru
          _
        // Predicated region
        $region37: #{tpu_custom_call.1} parent=31 // pred_check
          %p240 = pneg %p69
        $region38: #{tpu_custom_call.1} parent=31 // pred_check_branch
          %242 = sbr.rel (%p240) target = $region40
        $region39: #{tpu_custom_call.1} parent=31 // pred_region
          %244 = dma.done [#allocation6], 512
        $region40: #{tpu_custom_call.1} parent=31 // pred_fallthru
          _
        %s245 = sand.u32 %s35, 1
        %s246 = scalar_lea.sflag [#allocation3], %s245
        %s247 = sand.u32 %s35, 1
        %s248 = smul.addr %s247, 8
        %s249 = scalar_lea.vmem [#allocation2], %s248
        %p250 = pneg %p48
        %p251 = pneg %p45
        %p252 = pneg %p69
        %p253 = pneg %p66
        %p254 = pneg %p90
        %p255 = pneg %p87
        %p256 = pneg %p116
        %p257 = pneg %p113
        %s258 = sand.u32 %s103, 1
        %s259 = scalar_lea.sflag [#allocation4], %s258
        %s260 = sand.u32 %s103, 1
        %s261 = smul.addr %s260, 8
        %s262 = scalar_lea.vmem [#allocation7], %s261
        %p263 = pneg %p142
        %p264 = pneg %p139
        %s265 = sand.u32 %s27, 1
        %s266 = scalar_lea.sflag [#allocation9], %s265
        %s267 = sand.u32 %s129, 1
        %s268 = smul.addr %s267, 8
        %s269 = scalar_lea.vmem [#allocation8], %s268
        %p270 = pneg %p168
        %p271 = pneg %p165
        %s272 = sand.u32 %s27, 1
        %s273 = scalar_lea.sflag [#allocation9], %s272
        %s274 = sand.u32 %s155, 1
        %s275 = smul.addr %s274, 8
        %s276 = scalar_lea.vmem [#allocation10], %s275
        %v277 = vld [vmem:[%s234] sm:$0xff]
        %v278 = vld [vmem:[#allocation5] sm:$0xff]
        %v279 = vld [vmem:[#allocation5 + $0x8] sm:$0xff]
        %v280 = vld [vmem:[#allocation5 + $0x10] sm:$0xff]
        %v281 = vld [vmem:[#allocation5 + $0x18] sm:$0xff]
        %v282 = vld [vmem:[%s2] sm:$0x1]
        %v284 = vperm.slane %v282, 0
        %vm286 = vcmask 261120
        %v288 = vsel %vm286, %v277, 0
        %290 = vmatpush.msra.mxu0 0.0
        %291 = vmatpush.msra.mxu0 0.0
        %292 = vmatpush.msra.mxu0 0.0
        %293 = vmatpush.msra.mxu0 0.0
        %294 = vmatpush.msra.mxu0 0.0
        %295 = vmatpush.msra.mxu0 0.0
        %296 = vmatpush.msra.mxu0 0.0
        %297 = vmatpush.msra.mxu0 0.0
        %298 = vmatpush.msra.mxu0 0.0
        %299 = vmatpush.msra.mxu0 0.0
        %300 = vmatpush.msra.mxu0 0.0
        %301 = vmatpush.msra.mxu0 0.0
        %v302 = vand.u32 %v281, 4294901760
        %303 = vmatpush.msra.mxu0 %v302
        %v304 = vand.u32 %v280, 4294901760
        %305 = vmatpush.msra.mxu0 %v304
        %v306 = vand.u32 %v279, 4294901760
        %307 = vmatpush.msra.mxu0 %v306
        %v308 = vand.u32 %v278, 4294901760
        %309 = vmatpush.msra.mxu0 %v308
        %v310 = vand.u32 %v288, 4294901760
        %v311 = vsub.f32 %v288, %v310
        %v312 = vand.u32 %v311, 4294901760
        %v313 = vsub.f32 %v311, %v312
        %v314 = vand.u32 %v313, 4294901760
        %315 = vmatmul.f32.gmra.mxu0 %v314
        %v316 = vpop.f32.mrf.mxu0
        %v317 = vadd.f32 %v284, %v316
        %318 = vdwg.mxu0
        %319 = vmatpush.msra.mxu0 0.0
        %320 = vmatpush.msra.mxu0 0.0
        %321 = vmatpush.msra.mxu0 0.0
        %322 = vmatpush.msra.mxu0 0.0
        %323 = vmatpush.msra.mxu0 0.0
        %324 = vmatpush.msra.mxu0 0.0
        %325 = vmatpush.msra.mxu0 0.0
        %326 = vmatpush.msra.mxu0 0.0
        %327 = vmatpush.msra.mxu0 0.0
        %328 = vmatpush.msra.mxu0 0.0
        %329 = vmatpush.msra.mxu0 0.0
        %330 = vmatpush.msra.mxu0 0.0
        %v331 = vand.u32 %v281, 4294901760
        %v332 = vsub.f32 %v281, %v331
        %v333 = vand.u32 %v332, 4294901760
        %v334 = vsub.f32 %v332, %v333
        %v335 = vand.u32 %v334, 4294901760
        %336 = vmatpush.msra.mxu0 %v335
        %v337 = vand.u32 %v280, 4294901760
        %v338 = vsub.f32 %v280, %v337
        %v339 = vand.u32 %v338, 4294901760
        %v340 = vsub.f32 %v338, %v339
        %v341 = vand.u32 %v340, 4294901760
        %342 = vmatpush.msra.mxu0 %v341
        %v343 = vand.u32 %v279, 4294901760
        %v344 = vsub.f32 %v279, %v343
        %v345 = vand.u32 %v344, 4294901760
        %v346 = vsub.f32 %v344, %v345
        %v347 = vand.u32 %v346, 4294901760
        %348 = vmatpush.msra.mxu0 %v347
        %v349 = vand.u32 %v278, 4294901760
        %v350 = vsub.f32 %v278, %v349
        %v351 = vand.u32 %v350, 4294901760
        %v352 = vsub.f32 %v350, %v351
        %v353 = vand.u32 %v352, 4294901760
        %354 = vmatpush.msra.mxu0 %v353
        %v355 = vand.u32 %v288, 4294901760
        %356 = vmatmul.f32.gmra.mxu0 %v355
        %v357 = vpop.f32.mrf.mxu0
        %v358 = vadd.f32 %v317, %v357
        %359 = vdwg.mxu0
        %360 = vmatpush.msra.mxu0 0.0
        %361 = vmatpush.msra.mxu0 0.0
        %362 = vmatpush.msra.mxu0 0.0
        %363 = vmatpush.msra.mxu0 0.0
        %364 = vmatpush.msra.mxu0 0.0
        %365 = vmatpush.msra.mxu0 0.0
        %366 = vmatpush.msra.mxu0 0.0
        %367 = vmatpush.msra.mxu0 0.0
        %368 = vmatpush.msra.mxu0 0.0
        %369 = vmatpush.msra.mxu0 0.0
        %370 = vmatpush.msra.mxu0 0.0
        %371 = vmatpush.msra.mxu0 0.0
        %v372 = vand.u32 %v281, 4294901760
        %v373 = vsub.f32 %v281, %v372
        %374 = vmatpush.msra.mxu0 %v373
        %v375 = vand.u32 %v280, 4294901760
        %v376 = vsub.f32 %v280, %v375
        %377 = vmatpush.msra.mxu0 %v376
        %v378 = vand.u32 %v279, 4294901760
        %v379 = vsub.f32 %v279, %v378
        %380 = vmatpush.msra.mxu0 %v379
        %v381 = vand.u32 %v278, 4294901760
        %v382 = vsub.f32 %v278, %v381
        %383 = vmatpush.msra.mxu0 %v382
        %v384 = vand.u32 %v288, 4294901760
        %v385 = vsub.f32 %v288, %v384
        %386 = vmatmul.f32.gmra.mxu0 %v385
        %v387 = vpop.f32.mrf.mxu0
        %v388 = vadd.f32 %v358, %v387
        %389 = vdwg.mxu0
        %390 = vmatpush.msra.mxu0 0.0
        %391 = vmatpush.msra.mxu0 0.0
        %392 = vmatpush.msra.mxu0 0.0
        %393 = vmatpush.msra.mxu0 0.0
        %394 = vmatpush.msra.mxu0 0.0
        %395 = vmatpush.msra.mxu0 0.0
        %396 = vmatpush.msra.mxu0 0.0
        %397 = vmatpush.msra.mxu0 0.0
        %398 = vmatpush.msra.mxu0 0.0
        %399 = vmatpush.msra.mxu0 0.0
        %400 = vmatpush.msra.mxu0 0.0
        %401 = vmatpush.msra.mxu0 0.0
        %v402 = vand.u32 %v281, 4294901760
        %403 = vmatpush.msra.mxu0 %v402
        %v404 = vand.u32 %v280, 4294901760
        %405 = vmatpush.msra.mxu0 %v404
        %v406 = vand.u32 %v279, 4294901760
        %407 = vmatpush.msra.mxu0 %v406
        %v408 = vand.u32 %v278, 4294901760
        %409 = vmatpush.msra.mxu0 %v408
        %v410 = vand.u32 %v288, 4294901760
        %v411 = vsub.f32 %v288, %v410
        %v412 = vand.u32 %v411, 4294901760
        %413 = vmatmul.f32.gmra.mxu0 %v412
        %v414 = vpop.f32.mrf.mxu0
        %v415 = vadd.f32 %v388, %v414
        %416 = vdwg.mxu0
        %417 = vmatpush.msra.mxu0 0.0
        %418 = vmatpush.msra.mxu0 0.0
        %419 = vmatpush.msra.mxu0 0.0
        %420 = vmatpush.msra.mxu0 0.0
        %421 = vmatpush.msra.mxu0 0.0
        %422 = vmatpush.msra.mxu0 0.0
        %423 = vmatpush.msra.mxu0 0.0
        %424 = vmatpush.msra.mxu0 0.0
        %425 = vmatpush.msra.mxu0 0.0
        %426 = vmatpush.msra.mxu0 0.0
        %427 = vmatpush.msra.mxu0 0.0
        %428 = vmatpush.msra.mxu0 0.0
        %v429 = vand.u32 %v281, 4294901760
        %v430 = vsub.f32 %v281, %v429
        %v431 = vand.u32 %v430, 4294901760
        %432 = vmatpush.msra.mxu0 %v431
        %v433 = vand.u32 %v280, 4294901760
        %v434 = vsub.f32 %v280, %v433
        %v435 = vand.u32 %v434, 4294901760
        %436 = vmatpush.msra.mxu0 %v435
        %v437 = vand.u32 %v279, 4294901760
        %v438 = vsub.f32 %v279, %v437
        %v439 = vand.u32 %v438, 4294901760
        %440 = vmatpush.msra.mxu0 %v439
        %v441 = vand.u32 %v278, 4294901760
        %v442 = vsub.f32 %v278, %v441
        %v443 = vand.u32 %v442, 4294901760
        %444 = vmatpush.msra.mxu0 %v443
        %v445 = vand.u32 %v288, 4294901760
        %446 = vmatmul.f32.gmra.mxu0 %v445
        %v447 = vpop.f32.mrf.mxu0
        %v448 = vadd.f32 %v415, %v447
        %449 = vdwg.mxu0
        %450 = vmatpush.msra.mxu0 0.0
        %451 = vmatpush.msra.mxu0 0.0
        %452 = vmatpush.msra.mxu0 0.0
        %453 = vmatpush.msra.mxu0 0.0
        %454 = vmatpush.msra.mxu0 0.0
        %455 = vmatpush.msra.mxu0 0.0
        %456 = vmatpush.msra.mxu0 0.0
        %457 = vmatpush.msra.mxu0 0.0
        %458 = vmatpush.msra.mxu0 0.0
        %459 = vmatpush.msra.mxu0 0.0
        %460 = vmatpush.msra.mxu0 0.0
        %461 = vmatpush.msra.mxu0 0.0
        %v462 = vand.u32 %v281, 4294901760
        %463 = vmatpush.msra.mxu0 %v462
        %v464 = vand.u32 %v280, 4294901760
        %465 = vmatpush.msra.mxu0 %v464
        %v466 = vand.u32 %v279, 4294901760
        %467 = vmatpush.msra.mxu0 %v466
        %v468 = vand.u32 %v278, 4294901760
        %469 = vmatpush.msra.mxu0 %v468
        %v470 = vand.u32 %v288, 4294901760
        %471 = vmatmul.f32.gmra.mxu0 %v470
        %v472 = vpop.f32.mrf.mxu0
        %v473 = vadd.f32 %v448, %v472
        %474 = vdwg.mxu0
        %475 = vst.msk [vmem:[%s262] sm:$0xff] %vm286, %v473
        %477 = vrot.lane.b32.xlu0 %v473, 96
        %v478 = vpop.permute.xlu0 %477
        %480 = vst.msk [vmem:[%s269] sm:$0xff] %vm286, %v478
        %481 = vrot.lane.b32.xlu0 %v473, 64
        %v482 = vpop.permute.xlu0 %481
        %484 = vst.msk [vmem:[%s276] sm:$0xff] %vm286, %v482
        %s485 = sand.u32 %s103, 1
        %s486 = scalar_lea.sflag [#allocation4], %s485
        %s487 = sand.u32 %s103, 1
        %s488 = smul.addr %s487, 8
        %s489 = scalar_lea.vmem [#allocation7], %s488
        %s490 = sand.u32 %s27, 1
        %s491 = scalar_lea.sflag [#allocation9], %s490
        %s492 = sand.u32 %s129, 1
        %s493 = smul.addr %s492, 8
        %s494 = scalar_lea.vmem [#allocation8], %s493
        %s495 = sand.u32 %s27, 1
        %s496 = scalar_lea.sflag [#allocation9], %s495
        %s497 = sand.u32 %s155, 1
        %s498 = smul.addr %s497, 8
        %s499 = scalar_lea.vmem [#allocation10], %s498
        // Predicated region
        $region41: #{tpu_custom_call.1} parent=31 // pred_check
          %p500 = pneg %p113
        $region42: #{tpu_custom_call.1} parent=31 // pred_check_branch
          %502 = sbr.rel (%p500) target = $region44
        $region43: #{tpu_custom_call.1} parent=31 // pred_region
          %504 = vsyncadd %s486, 0
          %s505 = smul.addr %s27, 8
          %s506 = scalar_lea.hbm %s3, %s505
          %s508 = sshll.u32 %s489, 4
          %s509 = int_to_ptr.vmem [resolvable:$true] %s508
          %s510 = sshll.u32 %s506, 4
          %s511 = int_to_ptr.hbm [resolvable:$true] %s510
          %513 = dma.vmem_to_hbm [thread:$0]  %s509, 128, %s511, %s486
        $region44: #{tpu_custom_call.1} parent=31 // pred_fallthru
          _
        // Predicated region
        $region45: #{tpu_custom_call.1} parent=31 // pred_check
          %p514 = pneg %p139
        $region46: #{tpu_custom_call.1} parent=31 // pred_check_branch
          %516 = sbr.rel (%p514) target = $region48
        $region47: #{tpu_custom_call.1} parent=31 // pred_region
          %518 = vsyncadd %s491, 0
          %s519 = smul.addr %s27, 8
          %s520 = scalar_lea.hbm %s4, %s519
          %s522 = sshll.u32 %s494, 4
          %s523 = int_to_ptr.vmem [resolvable:$true] %s522
          %s524 = sshll.u32 %s520, 4
          %s525 = int_to_ptr.hbm [resolvable:$true] %s524
          %527 = dma.vmem_to_hbm [thread:$0]  %s523, 128, %s525, %s491
        $region48: #{tpu_custom_call.1} parent=31 // pred_fallthru
          _
        // Predicated region
        $region49: #{tpu_custom_call.1} parent=31 // pred_check
          %p528 = pneg %p165
        $region50: #{tpu_custom_call.1} parent=31 // pred_check_branch
          %530 = sbr.rel (%p528) target = $region52
        $region51: #{tpu_custom_call.1} parent=31 // pred_region
          %532 = vsyncadd %s496, 0
          %s533 = smul.addr %s27, 8
          %s534 = scalar_lea.hbm %s5, %s533
          %s536 = sshll.u32 %s499, 4
          %s537 = int_to_ptr.vmem [resolvable:$true] %s536
          %s538 = sshll.u32 %s534, 4
          %s539 = int_to_ptr.hbm [resolvable:$true] %s538
          %541 = dma.vmem_to_hbm [thread:$0]  %s537, 128, %s539, %s496
        $region52: #{tpu_custom_call.1} parent=31 // pred_fallthru
          _
      $region32: #{tpu_custom_call.1} parent=5 // pred_fallthru
        _
      %p542 = scmp.le.s32.totalorder 2, %s22
      // Predicated region
      $region53: #{tpu_custom_call.1} parent=5 // pred_check
        %p543 = pneg %p542
      $region54: #{tpu_custom_call.1} parent=5 // pred_check_branch
        %545 = sbr.rel (%p543) target = $region56
      $region55: #{tpu_custom_call.1} parent=5 // pred_region
        %s546 = ssub.s32 %s22, 2
        // Predicated region
        $region57: #{tpu_custom_call.1} parent=55 // pred_check
          %p547 = pneg %p119
        $region58: #{tpu_custom_call.1} parent=55 // pred_check_branch
          %549 = sbr.rel (%p547) target = $region60
        $region59: #{tpu_custom_call.1} parent=55 // pred_region
          %s550 = sand.u32 %s104, 1
          %s551 = scalar_lea.sflag [#allocation4], %s550
          %s552 = sand.u32 %s104, 1
          %s553 = smul.addr %s552, 8
          %s554 = scalar_lea.vmem [#allocation7], %s553
          %556 = dma.done %s551, 128
        $region60: #{tpu_custom_call.1} parent=55 // pred_fallthru
          _
        // Predicated region
        $region61: #{tpu_custom_call.1} parent=55 // pred_check
          %p557 = pneg %p145
        $region62: #{tpu_custom_call.1} parent=55 // pred_check_branch
          %559 = sbr.rel (%p557) target = $region64
        $region63: #{tpu_custom_call.1} parent=55 // pred_region
          %s560 = sand.u32 %s28, 1
          %s561 = scalar_lea.sflag [#allocation9], %s560
          %s562 = sand.u32 %s130, 1
          %s563 = smul.addr %s562, 8
          %s564 = scalar_lea.vmem [#allocation8], %s563
          %566 = dma.done %s561, 128
        $region64: #{tpu_custom_call.1} parent=55 // pred_fallthru
          _
        // Predicated region
        $region65: #{tpu_custom_call.1} parent=55 // pred_check
          %p567 = pneg %p171
        $region66: #{tpu_custom_call.1} parent=55 // pred_check_branch
          %569 = sbr.rel (%p567) target = $region68
        $region67: #{tpu_custom_call.1} parent=55 // pred_region
          %s570 = sand.u32 %s28, 1
          %s571 = scalar_lea.sflag [#allocation9], %s570
          %s572 = sand.u32 %s156, 1
          %s573 = smul.addr %s572, 8
          %s574 = scalar_lea.vmem [#allocation10], %s573
          %576 = dma.done %s571, 128
        $region68: #{tpu_custom_call.1} parent=55 // pred_fallthru
          _
      $region56: #{tpu_custom_call.1} parent=5 // pred_fallthru
        _
    $region6: #{tpu_custom_call.1} parent=1 // loop_footer
      %s26 = sadd.s32 1, %s22
    $region7: #{tpu_custom_call.1} parent=1 // loop_footer_branch
      %21 = sbr.rel target = $region3
    $region8: #{tpu_custom_call.1} parent=1 // loop_exit
      _
    %577 = vsyncpa [#allocation3], 1
    %s578 = scalar_lea.sflag [#allocation3], 1
    %579 = vsyncpa %s578, 1
    %580 = vsyncpa [#allocation6], 1
    %581 = vsyncpa [#allocation4], 1
    %s582 = scalar_lea.sflag [#allocation4], 1
    %583 = vsyncpa %s582, 1
    %584 = vsyncpa [#allocation9], 1
    %s585 = scalar_lea.sflag [#allocation9], 1
    %586 = vsyncpa %s585, 1

</llo_original>
